<compile_context>
chip_gen: v5e
topology: v5e:2x2
jax: 0.10.0
libtpu: 0.0.40
codegen_flags: <defaults>
</compile_context>

<pallas_src>
import functools

import jax
import jax.numpy as jnp
from jax import lax
from jax.experimental import pallas as pl
from jax.experimental.pallas import tpu as pltpu


def lstm_kernel(x_ref, wih_ref, whh_ref, b_ref, wo_ref, bo_ref, out_ref,
                *, B, T, D, H):
    # x_ref  : (T*B, D)  time-major rows (row index = t*B + b)
    # wih_ref: (D, 4H)   transposed weight_ih_l0
    # whh_ref: (H, 4H)   transposed weight_hh_l0
    # b_ref  : (1, 4H)   bias_ih_l0 + bias_hh_l0
    # wo_ref : (1, H)    linear weight (PyTorch layout)
    # bo_ref : (1, 1)    linear bias
    # out_ref: (B, 1)
    G = 4 * H

    x = x_ref[...]                                          # (T*B, D)

    # ---- Hoisted input projection (off the serial chain) ----
    if D <= 8:
        # VPU broadcast FMAs: a K=D(=2) MXU matmul would be <2% utilized.
        zx = b_ref[...]                                     # (1, G) -> broadcasts
        for d in range(D):
            zx = zx + x[:, d:d + 1] * wih_ref[d:d + 1, :]
    else:
        zx = jnp.dot(x, wih_ref[...],
                     preferred_element_type=jnp.float32) + b_ref[...]
    zx = zx.reshape(T, B, G)    # time-major: zx[t] is a contiguous (B, G) slab

    # Recurrent weights cast to bf16 once; single-pass MXU matmul per step.
    whh_bf = whh_ref[...].astype(jnp.bfloat16)              # (H, 4H)

    # Lane mask for the tanh ("g") gate block [2H, 3H) of the (B, 4H) slab.
    lane = lax.broadcasted_iota(jnp.int32, (B, G), 1)
    is_g = jnp.logical_and(lane >= 2 * H, lane < 3 * H)

    h = jnp.ones((B, H), jnp.float32)   # h_0 = ones (module semantics)
    c = jnp.ones((B, H), jnp.float32)   # c_0 = ones

    # Statically unrolled time loop: only the recurrent matmul + gate math
    # remain on the serial dependence chain.
    for t in range(T):
        z = zx[t] + jnp.dot(h.astype(jnp.bfloat16), whh_bf,
                            preferred_element_type=jnp.float32)   # (B, 4H) f32
        # Single EUP pass: tanh(x) = 2*sigmoid(2x) - 1 on the g block.
        zs = jnp.where(is_g, 2.0 * z, z)
        s = jax.nn.sigmoid(zs)
        act = jnp.where(is_g, 2.0 * s - 1.0, s)
        i_g = act[:, 0 * H:1 * H]
        f_g = act[:, 1 * H:2 * H]
        g_g = act[:, 2 * H:3 * H]
        o_g = act[:, 3 * H:4 * H]
        c = f_g * c + i_g * g_g
        h = o_g * jnp.tanh(c)

    # ---- Final linear head: VPU multiply + lane reduction (no N=1 matmul) ----
    out_ref[...] = (jnp.sum(h * wo_ref[...], axis=-1, keepdims=True)
                    + bo_ref[...])


def lstm_forward(x_btd, wih_t, whh_t, b, wo, bo):
    """x_btd: (B, T, D_in) batch-first, like the PyTorch module call."""
    B, T, D = x_btd.shape
    H = whh_t.shape[0]

    # Pad batch to the 8-sublane f32 granule: every per-step MXU/EUP/VPU op
    # processes 8 sublanes regardless, so padded rows are free.
    Bp = -(-B // 8) * 8
    if Bp != B:
        x_btd = jnp.pad(x_btd, ((0, Bp - B), (0, 0), (0, 0)))

    # Time-major flatten (row = t*B + b): the tiny (B, T, D_in=2) transpose is
    # done by XLA outside the kernel, so every in-kernel per-step read is a
    # contiguous aligned (B, 4H) slab — no per-step sublane gather.
    x_tm = jnp.transpose(x_btd, (1, 0, 2)).reshape(T * Bp, D)

    vmem = pl.BlockSpec(memory_space=pltpu.MemorySpace.VMEM)
    kernel = functools.partial(lstm_kernel, B=Bp, T=T, D=D, H=H)
    out = pl.pallas_call(
        kernel,
        out_shape=jax.ShapeDtypeStruct((Bp, 1), jnp.float32),
        in_specs=[vmem] * 6,
        out_specs=vmem,
    )(x_tm, wih_t, whh_t, b, wo, bo)
    return out[:B]


def lstm_reference(x_btd, wih_t, whh_t, b, wo, bo):
    """Pure-JAX f32 reference with identical module semantics."""
    B, T, D = x_btd.shape
    H = whh_t.shape[0]
    h = jnp.ones((B, H), jnp.float32)
    c = jnp.ones((B, H), jnp.float32)
    for t in range(T):
        z = x_btd[:, t, :] @ wih_t + h @ whh_t + b
        i_g = jax.nn.sigmoid(z[:, 0 * H:1 * H])
        f_g = jax.nn.sigmoid(z[:, 1 * H:2 * H])
        g_g = jnp.tanh(z[:, 2 * H:3 * H])
        o_g = jax.nn.sigmoid(z[:, 3 * H:4 * H])
        c = f_g * c + i_g * g_g
        h = o_g * jnp.tanh(c)
    return jnp.sum(h * wo, axis=-1, keepdims=True) + bo


if __name__ == "__main__":
    # Small shapes consistent with the module (input_size=2, output_size=1).
    B, T, D_IN, H = 4, 8, 2, 32

    key = jax.random.PRNGKey(0)
    ks = jax.random.split(key, 7)
    k_init = 1.0 / jnp.sqrt(jnp.float32(H))  # PyTorch-style uniform init bound

    # PyTorch parameter shapes: weight_ih (4H, D_in), weight_hh (4H, H),
    # bias_ih (4H,), bias_hh (4H,), linear weight (1, H), linear bias (1,)
    w_ih = jax.random.uniform(ks[0], (4 * H, D_IN), jnp.float32, -k_init, k_init)
    w_hh = jax.random.uniform(ks[1], (4 * H, H), jnp.float32, -k_init, k_init)
    b_ih = jax.random.uniform(ks[2], (4 * H,), jnp.float32, -k_init, k_init)
    b_hh = jax.random.uniform(ks[3], (4 * H,), jnp.float32, -k_init, k_init)
    w_lin = jax.random.uniform(ks[4], (1, H), jnp.float32, -k_init, k_init)
    b_lin = jax.random.uniform(ks[5], (1,), jnp.float32, -k_init, k_init)

    # Kernel-friendly parameters (pre-transposed LSTM weights, fused bias).
    wih_t = jnp.transpose(w_ih)            # (D_in, 4H)
    whh_t = jnp.transpose(w_hh)            # (H, 4H)
    b_all = (b_ih + b_hh)[None, :]         # (1, 4H)
    wo = w_lin                             # (1, H)  — VPU row, no transpose
    bo = b_lin[None, :]                    # (1, 1)

    # Input: (B, T, D_in) batch-first, matching the PyTorch module call.
    x = jax.random.uniform(ks[6], (B, T, D_IN), jnp.float32)

    out = lstm_forward(x, wih_t, whh_t, b_all, wo, bo)
    out = jax.block_until_ready(out)

    ref = lstm_reference(x, wih_t, whh_t, b_all, wo, bo)
    assert out.shape == (B, 1)
    # Tolerance loosened vs 1e-5: the recurrent matmul uses bf16 MXU operands
    # (f32 accumulation); all other math is f32.
    assert jnp.allclose(out, ref, atol=3e-2, rtol=3e-2), (out, ref)

    print("KERNEL_OK")
</pallas_src>

<mosaic_0001>
module attributes {stable_mosaic.version = 11 : i64} {
  func.func @lstm_kernel(%arg0: memref<64x2xf32, #tpu.memory_space<vmem>>, %arg1: memref<2x128xf32, #tpu.memory_space<vmem>>, %arg2: memref<32x128xf32, #tpu.memory_space<vmem>>, %arg3: memref<1x128xf32, #tpu.memory_space<vmem>>, %arg4: memref<1x32xf32, #tpu.memory_space<vmem>>, %arg5: memref<1x1xf32, #tpu.memory_space<vmem>>, %arg6: memref<8x1xf32, #tpu.memory_space<vmem>>) attributes {dimension_semantics = [], scalar_prefetch = 0 : i64, scratch_operands = 0 : i64, tpu.core_type = #tpu.core_type<tc>} {
    %c0 = arith.constant 0 : index
    %c0_0 = arith.constant 0 : index
    %0 = vector.load %arg0[%c0, %c0_0] : memref<64x2xf32, #tpu.memory_space<vmem>>, vector<64x2xf32>
    %c0_1 = arith.constant 0 : index
    %c0_2 = arith.constant 0 : index
    %1 = vector.load %arg3[%c0_1, %c0_2] : memref<1x128xf32, #tpu.memory_space<vmem>>, vector<1x128xf32>
    %2 = vector.extract_strided_slice %0 {offsets = [0, 0], sizes = [64, 1], strides = [1, 1]} : vector<64x2xf32> to vector<64x1xf32>
    %c0_3 = arith.constant 0 : index
    %c0_4 = arith.constant 0 : index
    %3 = vector.load %arg1[%c0_3, %c0_4] : memref<2x128xf32, #tpu.memory_space<vmem>>, vector<1x128xf32>
    %4 = vector.broadcast %2 : vector<64x1xf32> to vector<64x128xf32>
    %5 = vector.broadcast %3 : vector<1x128xf32> to vector<64x128xf32>
    %6 = arith.mulf %4, %5 : vector<64x128xf32>
    %7 = vector.broadcast %1 : vector<1x128xf32> to vector<64x128xf32>
    %8 = arith.addf %7, %6 : vector<64x128xf32>
    %9 = vector.extract_strided_slice %0 {offsets = [0, 1], sizes = [64, 1], strides = [1, 1]} : vector<64x2xf32> to vector<64x1xf32>
    %c1 = arith.constant 1 : index
    %c0_5 = arith.constant 0 : index
    %10 = vector.load %arg1[%c1, %c0_5] : memref<2x128xf32, #tpu.memory_space<vmem>>, vector<1x128xf32>
    %11 = vector.broadcast %9 : vector<64x1xf32> to vector<64x128xf32>
    %12 = vector.broadcast %10 : vector<1x128xf32> to vector<64x128xf32>
    %13 = arith.mulf %11, %12 : vector<64x128xf32>
    %14 = arith.addf %8, %13 : vector<64x128xf32>
    %15 = vector.shape_cast %14 : vector<64x128xf32> to vector<8x8x128xf32>
    %c0_6 = arith.constant 0 : index
    %c0_7 = arith.constant 0 : index
    %16 = vector.load %arg2[%c0_6, %c0_7] : memref<32x128xf32, #tpu.memory_space<vmem>>, vector<32x128xf32>
    %17 = arith.truncf %16 : vector<32x128xf32> to vector<32x128xbf16>
    %18 = tpu.iota {dimensions = array<i32: 1>} : vector<8x128xi32>
    %c64_i32 = arith.constant 64 : i32
    %19 = vector.broadcast %c64_i32 : i32 to vector<8x128xi32>
    %20 = arith.cmpi sge, %18, %19 : vector<8x128xi32>
    %c96_i32 = arith.constant 96 : i32
    %21 = vector.broadcast %c96_i32 : i32 to vector<8x128xi32>
    %22 = arith.cmpi slt, %18, %21 : vector<8x128xi32>
    %23 = arith.andi %20, %22 : vector<8x128xi1>
    %cst = arith.constant 1.000000e+00 : f32
    %24 = vector.broadcast %cst : f32 to vector<8x32xf32>
    %cst_8 = arith.constant 1.000000e+00 : f32
    %25 = vector.broadcast %cst_8 : f32 to vector<8x32xf32>
    %26 = vector.extract_strided_slice %15 {offsets = [0, 0, 0], sizes = [1, 8, 128], strides = [1, 1, 1]} : vector<8x8x128xf32> to vector<1x8x128xf32>
    %27 = vector.shape_cast %26 : vector<1x8x128xf32> to vector<8x128xf32>
    %28 = arith.truncf %24 : vector<8x32xf32> to vector<8x32xbf16>
    %cst_9 = arith.constant dense<0.000000e+00> : vector<8x128xf32>
    %29 = tpu.matmul %28, %17, %cst_9 {dimension_numbers = #tpu.dot_dimension_numbers<[1], [0], [0], [1], [0, 0, 1, 1], [], []>} : vector<8x32xbf16>, vector<32x128xbf16>, vector<8x128xf32> -> vector<8x128xf32>
    %30 = arith.addf %27, %29 : vector<8x128xf32>
    %cst_10 = arith.constant 2.000000e+00 : f32
    %31 = vector.broadcast %cst_10 : f32 to vector<8x128xf32>
    %32 = arith.mulf %31, %30 : vector<8x128xf32>
    %33 = arith.select %23, %32, %30 : vector<8x128xi1>, vector<8x128xf32>
    %34 = arith.negf %33 : vector<8x128xf32>
    %35 = math.exp %34 : vector<8x128xf32>
    %cst_11 = arith.constant 1.000000e+00 : f32
    %36 = vector.broadcast %cst_11 : f32 to vector<8x128xf32>
    %37 = arith.addf %36, %35 : vector<8x128xf32>
    %38 = arith.divf %36, %37 : vector<8x128xf32>
    %cst_12 = arith.constant 2.000000e+00 : f32
    %39 = vector.broadcast %cst_12 : f32 to vector<8x128xf32>
    %40 = arith.mulf %39, %38 : vector<8x128xf32>
    %cst_13 = arith.constant 1.000000e+00 : f32
    %41 = vector.broadcast %cst_13 : f32 to vector<8x128xf32>
    %42 = arith.subf %40, %41 : vector<8x128xf32>
    %43 = arith.select %23, %42, %38 : vector<8x128xi1>, vector<8x128xf32>
    %44 = vector.extract_strided_slice %43 {offsets = [0, 0], sizes = [8, 32], strides = [1, 1]} : vector<8x128xf32> to vector<8x32xf32>
    %45 = vector.extract_strided_slice %43 {offsets = [0, 32], sizes = [8, 32], strides = [1, 1]} : vector<8x128xf32> to vector<8x32xf32>
    %46 = vector.extract_strided_slice %43 {offsets = [0, 64], sizes = [8, 32], strides = [1, 1]} : vector<8x128xf32> to vector<8x32xf32>
    %47 = vector.extract_strided_slice %43 {offsets = [0, 96], sizes = [8, 32], strides = [1, 1]} : vector<8x128xf32> to vector<8x32xf32>
    %48 = arith.mulf %45, %25 : vector<8x32xf32>
    %49 = arith.mulf %44, %46 : vector<8x32xf32>
    %50 = arith.addf %48, %49 : vector<8x32xf32>
    %51 = math.tanh %50 : vector<8x32xf32>
    %52 = arith.mulf %47, %51 : vector<8x32xf32>
    %53 = vector.extract_strided_slice %15 {offsets = [1, 0, 0], sizes = [1, 8, 128], strides = [1, 1, 1]} : vector<8x8x128xf32> to vector<1x8x128xf32>
    %54 = vector.shape_cast %53 : vector<1x8x128xf32> to vector<8x128xf32>
    %55 = arith.truncf %52 : vector<8x32xf32> to vector<8x32xbf16>
    %cst_14 = arith.constant dense<0.000000e+00> : vector<8x128xf32>
    %56 = tpu.matmul %55, %17, %cst_14 {dimension_numbers = #tpu.dot_dimension_numbers<[1], [0], [0], [1], [0, 0, 1, 1], [], []>} : vector<8x32xbf16>, vector<32x128xbf16>, vector<8x128xf32> -> vector<8x128xf32>
    %57 = arith.addf %54, %56 : vector<8x128xf32>
    %cst_15 = arith.constant 2.000000e+00 : f32
    %58 = vector.broadcast %cst_15 : f32 to vector<8x128xf32>
    %59 = arith.mulf %58, %57 : vector<8x128xf32>
    %60 = arith.select %23, %59, %57 : vector<8x128xi1>, vector<8x128xf32>
    %61 = arith.negf %60 : vector<8x128xf32>
    %62 = math.exp %61 : vector<8x128xf32>
    %cst_16 = arith.constant 1.000000e+00 : f32
    %63 = vector.broadcast %cst_16 : f32 to vector<8x128xf32>
    %64 = arith.addf %63, %62 : vector<8x128xf32>
    %65 = arith.divf %63, %64 : vector<8x128xf32>
    %cst_17 = arith.constant 2.000000e+00 : f32
    %66 = vector.broadcast %cst_17 : f32 to vector<8x128xf32>
    %67 = arith.mulf %66, %65 : vector<8x128xf32>
    %cst_18 = arith.constant 1.000000e+00 : f32
    %68 = vector.broadcast %cst_18 : f32 to vector<8x128xf32>
    %69 = arith.subf %67, %68 : vector<8x128xf32>
    %70 = arith.select %23, %69, %65 : vector<8x128xi1>, vector<8x128xf32>
    %71 = vector.extract_strided_slice %70 {offsets = [0, 0], sizes = [8, 32], strides = [1, 1]} : vector<8x128xf32> to vector<8x32xf32>
    %72 = vector.extract_strided_slice %70 {offsets = [0, 32], sizes = [8, 32], strides = [1, 1]} : vector<8x128xf32> to vector<8x32xf32>
    %73 = vector.extract_strided_slice %70 {offsets = [0, 64], sizes = [8, 32], strides = [1, 1]} : vector<8x128xf32> to vector<8x32xf32>
    %74 = vector.extract_strided_slice %70 {offsets = [0, 96], sizes = [8, 32], strides = [1, 1]} : vector<8x128xf32> to vector<8x32xf32>
    %75 = arith.mulf %72, %50 : vector<8x32xf32>
    %76 = arith.mulf %71, %73 : vector<8x32xf32>
    %77 = arith.addf %75, %76 : vector<8x32xf32>
    %78 = math.tanh %77 : vector<8x32xf32>
    %79 = arith.mulf %74, %78 : vector<8x32xf32>
    %80 = vector.extract_strided_slice %15 {offsets = [2, 0, 0], sizes = [1, 8, 128], strides = [1, 1, 1]} : vector<8x8x128xf32> to vector<1x8x128xf32>
    %81 = vector.shape_cast %80 : vector<1x8x128xf32> to vector<8x128xf32>
    %82 = arith.truncf %79 : vector<8x32xf32> to vector<8x32xbf16>
    %cst_19 = arith.constant dense<0.000000e+00> : vector<8x128xf32>
    %83 = tpu.matmul %82, %17, %cst_19 {dimension_numbers = #tpu.dot_dimension_numbers<[1], [0], [0], [1], [0, 0, 1, 1], [], []>} : vector<8x32xbf16>, vector<32x128xbf16>, vector<8x128xf32> -> vector<8x128xf32>
    %84 = arith.addf %81, %83 : vector<8x128xf32>
    %cst_20 = arith.constant 2.000000e+00 : f32
    %85 = vector.broadcast %cst_20 : f32 to vector<8x128xf32>
    %86 = arith.mulf %85, %84 : vector<8x128xf32>
    %87 = arith.select %23, %86, %84 : vector<8x128xi1>, vector<8x128xf32>
    %88 = arith.negf %87 : vector<8x128xf32>
    %89 = math.exp %88 : vector<8x128xf32>
    %cst_21 = arith.constant 1.000000e+00 : f32
    %90 = vector.broadcast %cst_21 : f32 to vector<8x128xf32>
    %91 = arith.addf %90, %89 : vector<8x128xf32>
    %92 = arith.divf %90, %91 : vector<8x128xf32>
    %cst_22 = arith.constant 2.000000e+00 : f32
    %93 = vector.broadcast %cst_22 : f32 to vector<8x128xf32>
    %94 = arith.mulf %93, %92 : vector<8x128xf32>
    %cst_23 = arith.constant 1.000000e+00 : f32
    %95 = vector.broadcast %cst_23 : f32 to vector<8x128xf32>
    %96 = arith.subf %94, %95 : vector<8x128xf32>
    %97 = arith.select %23, %96, %92 : vector<8x128xi1>, vector<8x128xf32>
    %98 = vector.extract_strided_slice %97 {offsets = [0, 0], sizes = [8, 32], strides = [1, 1]} : vector<8x128xf32> to vector<8x32xf32>
    %99 = vector.extract_strided_slice %97 {offsets = [0, 32], sizes = [8, 32], strides = [1, 1]} : vector<8x128xf32> to vector<8x32xf32>
    %100 = vector.extract_strided_slice %97 {offsets = [0, 64], sizes = [8, 32], strides = [1, 1]} : vector<8x128xf32> to vector<8x32xf32>
    %101 = vector.extract_strided_slice %97 {offsets = [0, 96], sizes = [8, 32], strides = [1, 1]} : vector<8x128xf32> to vector<8x32xf32>
    %102 = arith.mulf %99, %77 : vector<8x32xf32>
    %103 = arith.mulf %98, %100 : vector<8x32xf32>
    %104 = arith.addf %102, %103 : vector<8x32xf32>
    %105 = math.tanh %104 : vector<8x32xf32>
    %106 = arith.mulf %101, %105 : vector<8x32xf32>
    %107 = vector.extract_strided_slice %15 {offsets = [3, 0, 0], sizes = [1, 8, 128], strides = [1, 1, 1]} : vector<8x8x128xf32> to vector<1x8x128xf32>
    %108 = vector.shape_cast %107 : vector<1x8x128xf32> to vector<8x128xf32>
    %109 = arith.truncf %106 : vector<8x32xf32> to vector<8x32xbf16>
    %cst_24 = arith.constant dense<0.000000e+00> : vector<8x128xf32>
    %110 = tpu.matmul %109, %17, %cst_24 {dimension_numbers = #tpu.dot_dimension_numbers<[1], [0], [0], [1], [0, 0, 1, 1], [], []>} : vector<8x32xbf16>, vector<32x128xbf16>, vector<8x128xf32> -> vector<8x128xf32>
    %111 = arith.addf %108, %110 : vector<8x128xf32>
    %cst_25 = arith.constant 2.000000e+00 : f32
    %112 = vector.broadcast %cst_25 : f32 to vector<8x128xf32>
    %113 = arith.mulf %112, %111 : vector<8x128xf32>
    %114 = arith.select %23, %113, %111 : vector<8x128xi1>, vector<8x128xf32>
    %115 = arith.negf %114 : vector<8x128xf32>
    %116 = math.exp %115 : vector<8x128xf32>
    %cst_26 = arith.constant 1.000000e+00 : f32
    %117 = vector.broadcast %cst_26 : f32 to vector<8x128xf32>
    %118 = arith.addf %117, %116 : vector<8x128xf32>
    %119 = arith.divf %117, %118 : vector<8x128xf32>
    %cst_27 = arith.constant 2.000000e+00 : f32
    %120 = vector.broadcast %cst_27 : f32 to vector<8x128xf32>
    %121 = arith.mulf %120, %119 : vector<8x128xf32>
    %cst_28 = arith.constant 1.000000e+00 : f32
    %122 = vector.broadcast %cst_28 : f32 to vector<8x128xf32>
    %123 = arith.subf %121, %122 : vector<8x128xf32>
    %124 = arith.select %23, %123, %119 : vector<8x128xi1>, vector<8x128xf32>
    %125 = vector.extract_strided_slice %124 {offsets = [0, 0], sizes = [8, 32], strides = [1, 1]} : vector<8x128xf32> to vector<8x32xf32>
    %126 = vector.extract_strided_slice %124 {offsets = [0, 32], sizes = [8, 32], strides = [1, 1]} : vector<8x128xf32> to vector<8x32xf32>
    %127 = vector.extract_strided_slice %124 {offsets = [0, 64], sizes = [8, 32], strides = [1, 1]} : vector<8x128xf32> to vector<8x32xf32>
    %128 = vector.extract_strided_slice %124 {offsets = [0, 96], sizes = [8, 32], strides = [1, 1]} : vector<8x128xf32> to vector<8x32xf32>
    %129 = arith.mulf %126, %104 : vector<8x32xf32>
    %130 = arith.mulf %125, %127 : vector<8x32xf32>
    %131 = arith.addf %129, %130 : vector<8x32xf32>
    %132 = math.tanh %131 : vector<8x32xf32>
    %133 = arith.mulf %128, %132 : vector<8x32xf32>
    %134 = vector.extract_strided_slice %15 {offsets = [4, 0, 0], sizes = [1, 8, 128], strides = [1, 1, 1]} : vector<8x8x128xf32> to vector<1x8x128xf32>
    %135 = vector.shape_cast %134 : vector<1x8x128xf32> to vector<8x128xf32>
    %136 = arith.truncf %133 : vector<8x32xf32> to vector<8x32xbf16>
    %cst_29 = arith.constant dense<0.000000e+00> : vector<8x128xf32>
    %137 = tpu.matmul %136, %17, %cst_29 {dimension_numbers = #tpu.dot_dimension_numbers<[1], [0], [0], [1], [0, 0, 1, 1], [], []>} : vector<8x32xbf16>, vector<32x128xbf16>, vector<8x128xf32> -> vector<8x128xf32>
    %138 = arith.addf %135, %137 : vector<8x128xf32>
    %cst_30 = arith.constant 2.000000e+00 : f32
    %139 = vector.broadcast %cst_30 : f32 to vector<8x128xf32>
    %140 = arith.mulf %139, %138 : vector<8x128xf32>
    %141 = arith.select %23, %140, %138 : vector<8x128xi1>, vector<8x128xf32>
    %142 = arith.negf %141 : vector<8x128xf32>
    %143 = math.exp %142 : vector<8x128xf32>
    %cst_31 = arith.constant 1.000000e+00 : f32
    %144 = vector.broadcast %cst_31 : f32 to vector<8x128xf32>
    %145 = arith.addf %144, %143 : vector<8x128xf32>
    %146 = arith.divf %144, %145 : vector<8x128xf32>
    %cst_32 = arith.constant 2.000000e+00 : f32
    %147 = vector.broadcast %cst_32 : f32 to vector<8x128xf32>
    %148 = arith.mulf %147, %146 : vector<8x128xf32>
    %cst_33 = arith.constant 1.000000e+00 : f32
    %149 = vector.broadcast %cst_33 : f32 to vector<8x128xf32>
    %150 = arith.subf %148, %149 : vector<8x128xf32>
    %151 = arith.select %23, %150, %146 : vector<8x128xi1>, vector<8x128xf32>
    %152 = vector.extract_strided_slice %151 {offsets = [0, 0], sizes = [8, 32], strides = [1, 1]} : vector<8x128xf32> to vector<8x32xf32>
    %153 = vector.extract_strided_slice %151 {offsets = [0, 32], sizes = [8, 32], strides = [1, 1]} : vector<8x128xf32> to vector<8x32xf32>
    %154 = vector.extract_strided_slice %151 {offsets = [0, 64], sizes = [8, 32], strides = [1, 1]} : vector<8x128xf32> to vector<8x32xf32>
    %155 = vector.extract_strided_slice %151 {offsets = [0, 96], sizes = [8, 32], strides = [1, 1]} : vector<8x128xf32> to vector<8x32xf32>
    %156 = arith.mulf %153, %131 : vector<8x32xf32>
    %157 = arith.mulf %152, %154 : vector<8x32xf32>
    %158 = arith.addf %156, %157 : vector<8x32xf32>
    %159 = math.tanh %158 : vector<8x32xf32>
    %160 = arith.mulf %155, %159 : vector<8x32xf32>
    %161 = vector.extract_strided_slice %15 {offsets = [5, 0, 0], sizes = [1, 8, 128], strides = [1, 1, 1]} : vector<8x8x128xf32> to vector<1x8x128xf32>
    %162 = vector.shape_cast %161 : vector<1x8x128xf32> to vector<8x128xf32>
    %163 = arith.truncf %160 : vector<8x32xf32> to vector<8x32xbf16>
    %cst_34 = arith.constant dense<0.000000e+00> : vector<8x128xf32>
    %164 = tpu.matmul %163, %17, %cst_34 {dimension_numbers = #tpu.dot_dimension_numbers<[1], [0], [0], [1], [0, 0, 1, 1], [], []>} : vector<8x32xbf16>, vector<32x128xbf16>, vector<8x128xf32> -> vector<8x128xf32>
    %165 = arith.addf %162, %164 : vector<8x128xf32>
    %cst_35 = arith.constant 2.000000e+00 : f32
    %166 = vector.broadcast %cst_35 : f32 to vector<8x128xf32>
    %167 = arith.mulf %166, %165 : vector<8x128xf32>
    %168 = arith.select %23, %167, %165 : vector<8x128xi1>, vector<8x128xf32>
    %169 = arith.negf %168 : vector<8x128xf32>
    %170 = math.exp %169 : vector<8x128xf32>
    %cst_36 = arith.constant 1.000000e+00 : f32
    %171 = vector.broadcast %cst_36 : f32 to vector<8x128xf32>
    %172 = arith.addf %171, %170 : vector<8x128xf32>
    %173 = arith.divf %171, %172 : vector<8x128xf32>
    %cst_37 = arith.constant 2.000000e+00 : f32
    %174 = vector.broadcast %cst_37 : f32 to vector<8x128xf32>
    %175 = arith.mulf %174, %173 : vector<8x128xf32>
    %cst_38 = arith.constant 1.000000e+00 : f32
    %176 = vector.broadcast %cst_38 : f32 to vector<8x128xf32>
    %177 = arith.subf %175, %176 : vector<8x128xf32>
    %178 = arith.select %23, %177, %173 : vector<8x128xi1>, vector<8x128xf32>
    %179 = vector.extract_strided_slice %178 {offsets = [0, 0], sizes = [8, 32], strides = [1, 1]} : vector<8x128xf32> to vector<8x32xf32>
    %180 = vector.extract_strided_slice %178 {offsets = [0, 32], sizes = [8, 32], strides = [1, 1]} : vector<8x128xf32> to vector<8x32xf32>
    %181 = vector.extract_strided_slice %178 {offsets = [0, 64], sizes = [8, 32], strides = [1, 1]} : vector<8x128xf32> to vector<8x32xf32>
    %182 = vector.extract_strided_slice %178 {offsets = [0, 96], sizes = [8, 32], strides = [1, 1]} : vector<8x128xf32> to vector<8x32xf32>
    %183 = arith.mulf %180, %158 : vector<8x32xf32>
    %184 = arith.mulf %179, %181 : vector<8x32xf32>
    %185 = arith.addf %183, %184 : vector<8x32xf32>
    %186 = math.tanh %185 : vector<8x32xf32>
    %187 = arith.mulf %182, %186 : vector<8x32xf32>
    %188 = vector.extract_strided_slice %15 {offsets = [6, 0, 0], sizes = [1, 8, 128], strides = [1, 1, 1]} : vector<8x8x128xf32> to vector<1x8x128xf32>
    %189 = vector.shape_cast %188 : vector<1x8x128xf32> to vector<8x128xf32>
    %190 = arith.truncf %187 : vector<8x32xf32> to vector<8x32xbf16>
    %cst_39 = arith.constant dense<0.000000e+00> : vector<8x128xf32>
    %191 = tpu.matmul %190, %17, %cst_39 {dimension_numbers = #tpu.dot_dimension_numbers<[1], [0], [0], [1], [0, 0, 1, 1], [], []>} : vector<8x32xbf16>, vector<32x128xbf16>, vector<8x128xf32> -> vector<8x128xf32>
    %192 = arith.addf %189, %191 : vector<8x128xf32>
    %cst_40 = arith.constant 2.000000e+00 : f32
    %193 = vector.broadcast %cst_40 : f32 to vector<8x128xf32>
    %194 = arith.mulf %193, %192 : vector<8x128xf32>
    %195 = arith.select %23, %194, %192 : vector<8x128xi1>, vector<8x128xf32>
    %196 = arith.negf %195 : vector<8x128xf32>
    %197 = math.exp %196 : vector<8x128xf32>
    %cst_41 = arith.constant 1.000000e+00 : f32
    %198 = vector.broadcast %cst_41 : f32 to vector<8x128xf32>
    %199 = arith.addf %198, %197 : vector<8x128xf32>
    %200 = arith.divf %198, %199 : vector<8x128xf32>
    %cst_42 = arith.constant 2.000000e+00 : f32
    %201 = vector.broadcast %cst_42 : f32 to vector<8x128xf32>
    %202 = arith.mulf %201, %200 : vector<8x128xf32>
    %cst_43 = arith.constant 1.000000e+00 : f32
    %203 = vector.broadcast %cst_43 : f32 to vector<8x128xf32>
    %204 = arith.subf %202, %203 : vector<8x128xf32>
    %205 = arith.select %23, %204, %200 : vector<8x128xi1>, vector<8x128xf32>
    %206 = vector.extract_strided_slice %205 {offsets = [0, 0], sizes = [8, 32], strides = [1, 1]} : vector<8x128xf32> to vector<8x32xf32>
    %207 = vector.extract_strided_slice %205 {offsets = [0, 32], sizes = [8, 32], strides = [1, 1]} : vector<8x128xf32> to vector<8x32xf32>
    %208 = vector.extract_strided_slice %205 {offsets = [0, 64], sizes = [8, 32], strides = [1, 1]} : vector<8x128xf32> to vector<8x32xf32>
    %209 = vector.extract_strided_slice %205 {offsets = [0, 96], sizes = [8, 32], strides = [1, 1]} : vector<8x128xf32> to vector<8x32xf32>
    %210 = arith.mulf %207, %185 : vector<8x32xf32>
    %211 = arith.mulf %206, %208 : vector<8x32xf32>
    %212 = arith.addf %210, %211 : vector<8x32xf32>
    %213 = math.tanh %212 : vector<8x32xf32>
    %214 = arith.mulf %209, %213 : vector<8x32xf32>
    %215 = vector.extract_strided_slice %15 {offsets = [7, 0, 0], sizes = [1, 8, 128], strides = [1, 1, 1]} : vector<8x8x128xf32> to vector<1x8x128xf32>
    %216 = vector.shape_cast %215 : vector<1x8x128xf32> to vector<8x128xf32>
    %217 = arith.truncf %214 : vector<8x32xf32> to vector<8x32xbf16>
    %cst_44 = arith.constant dense<0.000000e+00> : vector<8x128xf32>
    %218 = tpu.matmul %217, %17, %cst_44 {dimension_numbers = #tpu.dot_dimension_numbers<[1], [0], [0], [1], [0, 0, 1, 1], [], []>} : vector<8x32xbf16>, vector<32x128xbf16>, vector<8x128xf32> -> vector<8x128xf32>
    %219 = arith.addf %216, %218 : vector<8x128xf32>
    %cst_45 = arith.constant 2.000000e+00 : f32
    %220 = vector.broadcast %cst_45 : f32 to vector<8x128xf32>
    %221 = arith.mulf %220, %219 : vector<8x128xf32>
    %222 = arith.select %23, %221, %219 : vector<8x128xi1>, vector<8x128xf32>
    %223 = arith.negf %222 : vector<8x128xf32>
    %224 = math.exp %223 : vector<8x128xf32>
    %cst_46 = arith.constant 1.000000e+00 : f32
    %225 = vector.broadcast %cst_46 : f32 to vector<8x128xf32>
    %226 = arith.addf %225, %224 : vector<8x128xf32>
    %227 = arith.divf %225, %226 : vector<8x128xf32>
    %cst_47 = arith.constant 2.000000e+00 : f32
    %228 = vector.broadcast %cst_47 : f32 to vector<8x128xf32>
    %229 = arith.mulf %228, %227 : vector<8x128xf32>
    %cst_48 = arith.constant 1.000000e+00 : f32
    %230 = vector.broadcast %cst_48 : f32 to vector<8x128xf32>
    %231 = arith.subf %229, %230 : vector<8x128xf32>
    %232 = arith.select %23, %231, %227 : vector<8x128xi1>, vector<8x128xf32>
    %233 = vector.extract_strided_slice %232 {offsets = [0, 0], sizes = [8, 32], strides = [1, 1]} : vector<8x128xf32> to vector<8x32xf32>
    %234 = vector.extract_strided_slice %232 {offsets = [0, 32], sizes = [8, 32], strides = [1, 1]} : vector<8x128xf32> to vector<8x32xf32>
    %235 = vector.extract_strided_slice %232 {offsets = [0, 64], sizes = [8, 32], strides = [1, 1]} : vector<8x128xf32> to vector<8x32xf32>
    %236 = vector.extract_strided_slice %232 {offsets = [0, 96], sizes = [8, 32], strides = [1, 1]} : vector<8x128xf32> to vector<8x32xf32>
    %237 = arith.mulf %234, %212 : vector<8x32xf32>
    %238 = arith.mulf %233, %235 : vector<8x32xf32>
    %239 = arith.addf %237, %238 : vector<8x32xf32>
    %240 = math.tanh %239 : vector<8x32xf32>
    %241 = arith.mulf %236, %240 : vector<8x32xf32>
    %c0_49 = arith.constant 0 : index
    %c0_50 = arith.constant 0 : index
    %242 = vector.load %arg4[%c0_49, %c0_50] : memref<1x32xf32, #tpu.memory_space<vmem>>, vector<1x32xf32>
    %243 = vector.broadcast %242 : vector<1x32xf32> to vector<8x32xf32>
    %244 = arith.mulf %241, %243 : vector<8x32xf32>
    %cst_51 = arith.constant dense<0.000000e+00> : vector<8xf32>
    %245 = vector.multi_reduction <add>, %244, %cst_51 [1] : vector<8x32xf32> to vector<8xf32>
    %246 = vector.shape_cast %245 : vector<8xf32> to vector<8x1xf32>
    %c0_52 = arith.constant 0 : index
    %c0_53 = arith.constant 0 : index
    %247 = vector.load %arg5[%c0_52, %c0_53] : memref<1x1xf32, #tpu.memory_space<vmem>>, vector<1x1xf32>
    %248 = vector.broadcast %247 : vector<1x1xf32> to vector<8x1xf32>
    %249 = arith.addf %246, %248 : vector<8x1xf32>
    %c0_54 = arith.constant 0 : index
    %c0_55 = arith.constant 0 : index
    %250 = vector.load %arg6[%c0_54, %c0_55] : memref<8x1xf32, #tpu.memory_space<vmem>>, vector<8x1xf32>
    tpu.vector_store %arg6[%c0_54, %c0_55], %249 {strides = array<i32>} : memref<8x1xf32, #tpu.memory_space<vmem>>, vector<8x1xf32>,
    return
  }
}

</mosaic_0001>

<llo_original>
// kernel: tpu_custom_call.1
$region0: #{tpu_custom_call.1}
  #allocation0 [shape = 'u32[]', space=smem, size = 0x4, offset = 0x4, fixed_abs, tag = 'smem constant byte address 0x4 - core index']
  #allocation1 [shape = 'u32[72,128]{1,0:T(1,128)}', space=vmem, size = 0x9000, scoped, tag = 'internal scratch']
  #allocation2 [shape = 'f32[1,1]{1,0:T(1,128)S(1)}', space=vmem, size = 0x200, scoped, tag = 'scoped memory for tpu_custom_call.1']
  %s0 = inlined_call_operand.vmem [shape: f32[64,2], index: 0, kind: input, shape index: {}]
  %s1 = inlined_call_operand.vmem [shape: f32[2,128], index: 1, kind: input, shape index: {}]
  %s2 = inlined_call_operand.vmem [shape: f32[32,128], index: 2, kind: input, shape index: {}]
  %s3 = inlined_call_operand.vmem [shape: f32[1,128], index: 3, kind: input, shape index: {}]
  %s4 = inlined_call_operand.vmem [shape: f32[1,32], index: 4, kind: input, shape index: {}]
  %s5 = inlined_call_operand.<no memory space> [shape: f32[1,1], index: 5, kind: input, shape index: {}]
  %s6 = inlined_call_operand.vmem [shape: f32[8,1], index: 6, kind: output, shape index: {}]
  %s7 = sld [smem:[#allocation0]]
  $region34: #{tpu_custom_call.1} parent=0
    _
  %s9 = ssub.s32 1, %s7
  %s10 = scalar_select 0, %s9, %s7
  %v11 = vstv %s5
  %12 = vst [vmem:[#allocation2] sm:$0x1] %v11
  // Predicated region
  $region2: #{tpu_custom_call.1} parent=0 // pred_check
    _
  $region3: #{tpu_custom_call.1} parent=0 // pred_check_branch
    %14 = sbr.rel (0) target = $region5
  $region4: #{tpu_custom_call.1} parent=0 // pred_region
    _
  $region5: #{tpu_custom_call.1} parent=0 // pred_fallthru
    _
  // Predicated region
  $region6: #{tpu_custom_call.1} parent=0 // pred_check
    _
  $region7: #{tpu_custom_call.1} parent=0 // pred_check_branch
    %16 = sbr.rel (0) target = $region9
  $region8: #{tpu_custom_call.1} parent=0 // pred_region
    _
  $region9: #{tpu_custom_call.1} parent=0 // pred_fallthru
    _
  // Predicated region
  $region10: #{tpu_custom_call.1} parent=0 // pred_check
    _
  $region11: #{tpu_custom_call.1} parent=0 // pred_check_branch
    %18 = sbr.rel (0) target = $region13
  $region12: #{tpu_custom_call.1} parent=0 // pred_region
    _
  $region13: #{tpu_custom_call.1} parent=0 // pred_fallthru
    _
  // Predicated region
  $region14: #{tpu_custom_call.1} parent=0 // pred_check
    _
  $region15: #{tpu_custom_call.1} parent=0 // pred_check_branch
    %20 = sbr.rel (0) target = $region17
  $region16: #{tpu_custom_call.1} parent=0 // pred_region
    _
  $region17: #{tpu_custom_call.1} parent=0 // pred_fallthru
    _
  // Predicated region
  $region18: #{tpu_custom_call.1} parent=0 // pred_check
    _
  $region19: #{tpu_custom_call.1} parent=0 // pred_check_branch
    %22 = sbr.rel (0) target = $region21
  $region20: #{tpu_custom_call.1} parent=0 // pred_region
    _
  $region21: #{tpu_custom_call.1} parent=0 // pred_fallthru
    _
  // Predicated region
  $region22: #{tpu_custom_call.1} parent=0 // pred_check
    _
  $region23: #{tpu_custom_call.1} parent=0 // pred_check_branch
    %24 = sbr.rel (0) target = $region25
  $region24: #{tpu_custom_call.1} parent=0 // pred_region
    _
  $region25: #{tpu_custom_call.1} parent=0 // pred_fallthru
    _
  %v27 = vld [vmem:[%s0] sm:$0xff]
  %v28 = vld [vmem:[%s0 + $0x8] sm:$0xff]
  %v29 = vld [vmem:[%s0 + $0x10] sm:$0xff]
  %v30 = vld [vmem:[%s0 + $0x18] sm:$0xff]
  %v31 = vld [vmem:[%s0 + $0x20] sm:$0xff]
  %v32 = vld [vmem:[%s0 + $0x28] sm:$0xff]
  %v33 = vld [vmem:[%s0 + $0x30] sm:$0xff]
  %v34 = vld [vmem:[%s0 + $0x38] sm:$0xff]
  %v35 = vld [vmem:[%s3] sm:$0x1]
  %v36 = vld [vmem:[%s1] sm:$0x1]
  %38 = vset.pattern.permute.xlu0 0
  %39 = vperm.xlu0 %38, %v27
  %v40 = vpop.permute.xlu0 %39
  %43 = vset.pattern.permute.xlu0 0
  %44 = vperm.xlu0 %43, %v28
  %v45 = vpop.permute.xlu0 %44
  %48 = vset.pattern.permute.xlu0 0
  %49 = vperm.xlu0 %48, %v29
  %v50 = vpop.permute.xlu0 %49
  %53 = vset.pattern.permute.xlu0 0
  %54 = vperm.xlu0 %53, %v30
  %v55 = vpop.permute.xlu0 %54
  %58 = vset.pattern.permute.xlu0 0
  %59 = vperm.xlu0 %58, %v31
  %v60 = vpop.permute.xlu0 %59
  %63 = vset.pattern.permute.xlu0 0
  %64 = vperm.xlu0 %63, %v32
  %v65 = vpop.permute.xlu0 %64
  %68 = vset.pattern.permute.xlu0 0
  %69 = vperm.xlu0 %68, %v33
  %v70 = vpop.permute.xlu0 %69
  %73 = vset.pattern.permute.xlu0 0
  %74 = vperm.xlu0 %73, %v34
  %v75 = vpop.permute.xlu0 %74
  %v77 = vperm.slane %v36, 0
  %v78 = vmul.f32 %v40, %v77
  %v79 = vmul.f32 %v45, %v77
  %v80 = vmul.f32 %v50, %v77
  %v81 = vmul.f32 %v55, %v77
  %v82 = vmul.f32 %v60, %v77
  %v83 = vmul.f32 %v65, %v77
  %v84 = vmul.f32 %v70, %v77
  %v85 = vmul.f32 %v75, %v77
  %v87 = vperm.slane %v35, 0
  %v89 = vadd.f32 %v87, %v78
  %v90 = vadd.f32 %v87, %v79
  %v91 = vadd.f32 %v87, %v80
  %v92 = vadd.f32 %v87, %v81
  %v93 = vadd.f32 %v87, %v82
  %v94 = vadd.f32 %v87, %v83
  %v95 = vadd.f32 %v87, %v84
  %v96 = vadd.f32 %v87, %v85
  %v97 = vld [vmem:[%s1 + $0x1] sm:$0x1]
  %98 = vset.pattern.permute.xlu0 1
  %99 = vperm.xlu0 %98, %v27
  %v100 = vpop.permute.xlu0 %99
  %102 = vset.pattern.permute.xlu0 1
  %103 = vperm.xlu0 %102, %v28
  %v104 = vpop.permute.xlu0 %103
  %106 = vset.pattern.permute.xlu0 1
  %107 = vperm.xlu0 %106, %v29
  %v108 = vpop.permute.xlu0 %107
  %110 = vset.pattern.permute.xlu0 1
  %111 = vperm.xlu0 %110, %v30
  %v112 = vpop.permute.xlu0 %111
  %114 = vset.pattern.permute.xlu0 1
  %115 = vperm.xlu0 %114, %v31
  %v116 = vpop.permute.xlu0 %115
  %118 = vset.pattern.permute.xlu0 1
  %119 = vperm.xlu0 %118, %v32
  %v120 = vpop.permute.xlu0 %119
  %122 = vset.pattern.permute.xlu0 1
  %123 = vperm.xlu0 %122, %v33
  %v124 = vpop.permute.xlu0 %123
  %126 = vset.pattern.permute.xlu0 1
  %127 = vperm.xlu0 %126, %v34
  %v128 = vpop.permute.xlu0 %127
  %v130 = vperm.slane %v97, 0
  %v131 = vmul.f32 %v100, %v130
  %v132 = vmul.f32 %v104, %v130
  %v133 = vmul.f32 %v108, %v130
  %v134 = vmul.f32 %v112, %v130
  %v135 = vmul.f32 %v116, %v130
  %v136 = vmul.f32 %v120, %v130
  %v137 = vmul.f32 %v124, %v130
  %v138 = vmul.f32 %v128, %v130
  %v139 = vadd.f32 %v89, %v131
  %v140 = vadd.f32 %v90, %v132
  %v141 = vadd.f32 %v91, %v133
  %v142 = vadd.f32 %v92, %v134
  %v143 = vadd.f32 %v93, %v135
  %v144 = vadd.f32 %v94, %v136
  %v145 = vadd.f32 %v95, %v137
  %v146 = vadd.f32 %v96, %v138
  %v147 = vld [vmem:[%s2] sm:$0xff]
  %v148 = vld [vmem:[%s2 + $0x8] sm:$0xff]
  %v149 = vld [vmem:[%s2 + $0x10] sm:$0xff]
  %v150 = vld [vmem:[%s2 + $0x18] sm:$0xff]
  %v151 = vpack.c.bf16 %v148, %v147
  %v152 = vpack.c.bf16 %v150, %v149
  %v153 = vlaneseq
  %v154 = vand.u32 %v153, 127
  %vm155 = vcmp.ge.s32.totalorder %v154, 64
  %vm156 = vcmp.lt.s32.totalorder %v154, 96
  %vm157 = vmand %vm155, %vm156
  %vm158 = vcmask 261120
  %v160 = vsel %vm158, 1065369472, 0
  %162 = vmatpush.bf16.msra.mxu0 0
  %163 = vmatpush.bf16.msra.mxu0 0
  %164 = vmatpush.bf16.msra.mxu0 0
  %165 = vmatpush.bf16.msra.mxu0 0
  %166 = vmatpush.bf16.msra.mxu0 0
  %167 = vmatpush.bf16.msra.mxu0 0
  %168 = vmatpush.bf16.msra.mxu0 %v152
  %169 = vmatpush.bf16.msra.mxu0 %v151
  %170 = vmatmul.bf16.gmra.mxu0 %v160
  %v171 = vpop.f32.mrf.mxu0
  %v172 = vadd.f32 0.0, %v171
  %v173 = vpop.f32.mrf.mxu0
  %174 = vdwg.mxu0
  %v175 = vadd.f32 %v139, %v172
  %v176 = vmul.f32 %v175, 2.0
  %v177 = vsel %vm157, %v176, %v175
  %v178 = vxor.u32 %v177, 2147483648
  %v179 = vmul.f32 %v178, 1.442695
  %v180 = vpow.pop %v179
  %v181 = vadd.f32 %v180, 1.0
  %v182 = vrcp.pop %v181
  %v183 = vmul.f32 %v181, %v182
  %v184 = vsub.f32 1.0, %v183
  %v185 = vmul.f32 %v182, %v184
  %v186 = vadd.f32 %v182, %v185
  %vm187 = vweird.f32 %v181
  %vm188 = vweird.f32 %v182
  %vm189 = vmor %vm187, %vm188
  %v190 = vsel %vm189, %v182, %v186
  %v191 = vand.u32 2147483647, %v181
  %vm192 = vcmp.eq.f32.partialorder %v191, 8.507059e+37
  %v193 = vand.u32 %v181, 2147483648
  %v194 = vor.u32 1.1754944e-38, %v193
  %v195 = vsel %vm192, %v194, %v190
  %v196 = vmul.f32 1.0, %v195
  %v197 = vmul.f32 %v196, 2.0
  %v198 = vsub.f32 %v197, 1.0
  %v199 = vsel %vm157, %v198, %v196
  %201 = vrot.lane.b32.xlu0 %v199, 64
  %v202 = vpop.permute.xlu0 %201
  %v204 = vmul.f32 %v199, %v202
  %206 = vrot.lane.b32.xlu0 %v204, 32
  %v207 = vpop.permute.xlu0 %206
  %v209 = vadd.f32 %v199, %v207
  %v210 = vtanh.pop %v209
  %212 = vrot.lane.b32.xlu0 %v210, 64
  %v213 = vpop.permute.xlu0 %212
  %v215 = vmul.f32 %v199, %v213
  %v216 = vpack.c.bf16 %v215, %v215
  %218 = vrot.lane.b32.xlu0 %v216, 32
  %v219 = vpop.permute.xlu0 %218
  %v221 = vsel %vm158, %v219, 0
  %223 = vmatpush.bf16.msra.mxu0 0
  %224 = vmatpush.bf16.msra.mxu0 0
  %225 = vmatpush.bf16.msra.mxu0 0
  %226 = vmatpush.bf16.msra.mxu0 0
  %227 = vmatpush.bf16.msra.mxu0 0
  %228 = vmatpush.bf16.msra.mxu0 0
  %229 = vmatpush.bf16.msra.mxu0 %v152
  %230 = vmatpush.bf16.msra.mxu0 %v151
  %231 = vmatmul.bf16.gmra.mxu0 %v221
  %v232 = vpop.f32.mrf.mxu0
  %v233 = vadd.f32 0.0, %v232
  %v234 = vpop.f32.mrf.mxu0
  %235 = vdwg.mxu0
  %v236 = vadd.f32 %v140, %v233
  %v237 = vmul.f32 %v236, 2.0
  %v238 = vsel %vm157, %v237, %v236
  %v239 = vxor.u32 %v238, 2147483648
  %v240 = vmul.f32 %v239, 1.442695
  %v241 = vpow.pop %v240
  %v242 = vadd.f32 %v241, 1.0
  %v243 = vrcp.pop %v242
  %v244 = vmul.f32 %v242, %v243
  %v245 = vsub.f32 1.0, %v244
  %v246 = vmul.f32 %v243, %v245
  %v247 = vadd.f32 %v243, %v246
  %vm248 = vweird.f32 %v242
  %vm249 = vweird.f32 %v243
  %vm250 = vmor %vm248, %vm249
  %v251 = vsel %vm250, %v243, %v247
  %v252 = vand.u32 2147483647, %v242
  %vm253 = vcmp.eq.f32.partialorder %v252, 8.507059e+37
  %v254 = vand.u32 %v242, 2147483648
  %v255 = vor.u32 1.1754944e-38, %v254
  %v256 = vsel %vm253, %v255, %v251
  %v257 = vmul.f32 1.0, %v256
  %v258 = vmul.f32 %v257, 2.0
  %v259 = vsub.f32 %v258, 1.0
  %v260 = vsel %vm157, %v259, %v257
  %v261 = vmul.f32 %v260, %v209
  %263 = vrot.lane.b32.xlu0 %v260, 64
  %v264 = vpop.permute.xlu0 %263
  %v266 = vmul.f32 %v260, %v264
  %268 = vrot.lane.b32.xlu0 %v266, 32
  %v269 = vpop.permute.xlu0 %268
  %v271 = vadd.f32 %v261, %v269
  %v272 = vtanh.pop %v271
  %274 = vrot.lane.b32.xlu0 %v272, 64
  %v275 = vpop.permute.xlu0 %274
  %v277 = vmul.f32 %v260, %v275
  %v278 = vpack.c.bf16 %v277, %v277
  %280 = vrot.lane.b32.xlu0 %v278, 32
  %v281 = vpop.permute.xlu0 %280
  %v283 = vsel %vm158, %v281, 0
  %285 = vmatpush.bf16.msra.mxu0 0
  %286 = vmatpush.bf16.msra.mxu0 0
  %287 = vmatpush.bf16.msra.mxu0 0
  %288 = vmatpush.bf16.msra.mxu0 0
  %289 = vmatpush.bf16.msra.mxu0 0
  %290 = vmatpush.bf16.msra.mxu0 0
  %291 = vmatpush.bf16.msra.mxu0 %v152
  %292 = vmatpush.bf16.msra.mxu0 %v151
  %293 = vmatmul.bf16.gmra.mxu0 %v283
  %v294 = vpop.f32.mrf.mxu0
  %v295 = vadd.f32 0.0, %v294
  %v296 = vpop.f32.mrf.mxu0
  %297 = vdwg.mxu0
  %v298 = vadd.f32 %v141, %v295
  %v299 = vmul.f32 %v298, 2.0
  %v300 = vsel %vm157, %v299, %v298
  %v301 = vxor.u32 %v300, 2147483648
  %v302 = vmul.f32 %v301, 1.442695
  %v303 = vpow.pop %v302
  %v304 = vadd.f32 %v303, 1.0
  %v305 = vrcp.pop %v304
  %v306 = vmul.f32 %v304, %v305
  %v307 = vsub.f32 1.0, %v306
  %v308 = vmul.f32 %v305, %v307
  %v309 = vadd.f32 %v305, %v308
  %vm310 = vweird.f32 %v304
  %vm311 = vweird.f32 %v305
  %vm312 = vmor %vm310, %vm311
  %v313 = vsel %vm312, %v305, %v309
  %v314 = vand.u32 2147483647, %v304
  %vm315 = vcmp.eq.f32.partialorder %v314, 8.507059e+37
  %v316 = vand.u32 %v304, 2147483648
  %v317 = vor.u32 1.1754944e-38, %v316
  %v318 = vsel %vm315, %v317, %v313
  %v319 = vmul.f32 1.0, %v318
  %v320 = vmul.f32 %v319, 2.0
  %v321 = vsub.f32 %v320, 1.0
  %v322 = vsel %vm157, %v321, %v319
  %v323 = vmul.f32 %v322, %v271
  %325 = vrot.lane.b32.xlu0 %v322, 64
  %v326 = vpop.permute.xlu0 %325
  %v328 = vmul.f32 %v322, %v326
  %330 = vrot.lane.b32.xlu0 %v328, 32
  %v331 = vpop.permute.xlu0 %330
  %v333 = vadd.f32 %v323, %v331
  %v334 = vtanh.pop %v333
  %336 = vrot.lane.b32.xlu0 %v334, 64
  %v337 = vpop.permute.xlu0 %336
  %v339 = vmul.f32 %v322, %v337
  %v340 = vpack.c.bf16 %v339, %v339
  %342 = vrot.lane.b32.xlu0 %v340, 32
  %v343 = vpop.permute.xlu0 %342
  %v345 = vsel %vm158, %v343, 0
  %347 = vmatpush.bf16.msra.mxu0 0
  %348 = vmatpush.bf16.msra.mxu0 0
  %349 = vmatpush.bf16.msra.mxu0 0
  %350 = vmatpush.bf16.msra.mxu0 0
  %351 = vmatpush.bf16.msra.mxu0 0
  %352 = vmatpush.bf16.msra.mxu0 0
  %353 = vmatpush.bf16.msra.mxu0 %v152
  %354 = vmatpush.bf16.msra.mxu0 %v151
  %355 = vmatmul.bf16.gmra.mxu0 %v345
  %v356 = vpop.f32.mrf.mxu0
  %v357 = vadd.f32 0.0, %v356
  %v358 = vpop.f32.mrf.mxu0
  %359 = vdwg.mxu0
  %v360 = vadd.f32 %v142, %v357
  %v361 = vmul.f32 %v360, 2.0
  %v362 = vsel %vm157, %v361, %v360
  %v363 = vxor.u32 %v362, 2147483648
  %v364 = vmul.f32 %v363, 1.442695
  %v365 = vpow.pop %v364
  %v366 = vadd.f32 %v365, 1.0
  %v367 = vrcp.pop %v366
  %v368 = vmul.f32 %v366, %v367
  %v369 = vsub.f32 1.0, %v368
  %v370 = vmul.f32 %v367, %v369
  %v371 = vadd.f32 %v367, %v370
  %vm372 = vweird.f32 %v366
  %vm373 = vweird.f32 %v367
  %vm374 = vmor %vm372, %vm373
  %v375 = vsel %vm374, %v367, %v371
  %v376 = vand.u32 2147483647, %v366
  %vm377 = vcmp.eq.f32.partialorder %v376, 8.507059e+37
  %v378 = vand.u32 %v366, 2147483648
  %v379 = vor.u32 1.1754944e-38, %v378
  %v380 = vsel %vm377, %v379, %v375
  %v381 = vmul.f32 1.0, %v380
  %v382 = vmul.f32 %v381, 2.0
  %v383 = vsub.f32 %v382, 1.0
  %v384 = vsel %vm157, %v383, %v381
  %v385 = vmul.f32 %v384, %v333
  %387 = vrot.lane.b32.xlu0 %v384, 64
  %v388 = vpop.permute.xlu0 %387
  %v390 = vmul.f32 %v384, %v388
  %392 = vrot.lane.b32.xlu0 %v390, 32
  %v393 = vpop.permute.xlu0 %392
  %v395 = vadd.f32 %v385, %v393
  %v396 = vtanh.pop %v395
  %398 = vrot.lane.b32.xlu0 %v396, 64
  %v399 = vpop.permute.xlu0 %398
  %v401 = vmul.f32 %v384, %v399
  %v402 = vpack.c.bf16 %v401, %v401
  %404 = vrot.lane.b32.xlu0 %v402, 32
  %v405 = vpop.permute.xlu0 %404
  %v407 = vsel %vm158, %v405, 0
  %409 = vmatpush.bf16.msra.mxu0 0
  %410 = vmatpush.bf16.msra.mxu0 0
  %411 = vmatpush.bf16.msra.mxu0 0
  %412 = vmatpush.bf16.msra.mxu0 0
  %413 = vmatpush.bf16.msra.mxu0 0
  %414 = vmatpush.bf16.msra.mxu0 0
  %415 = vmatpush.bf16.msra.mxu0 %v152
  %416 = vmatpush.bf16.msra.mxu0 %v151
  %417 = vmatmul.bf16.gmra.mxu0 %v407
  %v418 = vpop.f32.mrf.mxu0
  %v419 = vadd.f32 0.0, %v418
  %v420 = vpop.f32.mrf.mxu0
  %421 = vdwg.mxu0
  %v422 = vadd.f32 %v143, %v419
  %v423 = vmul.f32 %v422, 2.0
  %v424 = vsel %vm157, %v423, %v422
  %v425 = vxor.u32 %v424, 2147483648
  %v426 = vmul.f32 %v425, 1.442695
  %v427 = vpow.pop %v426
  %v428 = vadd.f32 %v427, 1.0
  %v429 = vrcp.pop %v428
  %v430 = vmul.f32 %v428, %v429
  %v431 = vsub.f32 1.0, %v430
  %v432 = vmul.f32 %v429, %v431
  %v433 = vadd.f32 %v429, %v432
  %vm434 = vweird.f32 %v428
  %vm435 = vweird.f32 %v429
  %vm436 = vmor %vm434, %vm435
  %v437 = vsel %vm436, %v429, %v433
  %v438 = vand.u32 2147483647, %v428
  %vm439 = vcmp.eq.f32.partialorder %v438, 8.507059e+37
  %v440 = vand.u32 %v428, 2147483648
  %v441 = vor.u32 1.1754944e-38, %v440
  %v442 = vsel %vm439, %v441, %v437
  %v443 = vmul.f32 1.0, %v442
  %v444 = vmul.f32 %v443, 2.0
  %v445 = vsub.f32 %v444, 1.0
  %v446 = vsel %vm157, %v445, %v443
  %v447 = vmul.f32 %v446, %v395
  %449 = vrot.lane.b32.xlu0 %v446, 64
  %v450 = vpop.permute.xlu0 %449
  %v452 = vmul.f32 %v446, %v450
  %454 = vrot.lane.b32.xlu0 %v452, 32
  %v455 = vpop.permute.xlu0 %454
  %v457 = vadd.f32 %v447, %v455
  %v458 = vtanh.pop %v457
  %460 = vrot.lane.b32.xlu0 %v458, 64
  %v461 = vpop.permute.xlu0 %460
  %v463 = vmul.f32 %v446, %v461
  %v464 = vpack.c.bf16 %v463, %v463
  %466 = vrot.lane.b32.xlu0 %v464, 32
  %v467 = vpop.permute.xlu0 %466
  %v469 = vsel %vm158, %v467, 0
  %471 = vmatpush.bf16.msra.mxu0 0
  %472 = vmatpush.bf16.msra.mxu0 0
  %473 = vmatpush.bf16.msra.mxu0 0
  %474 = vmatpush.bf16.msra.mxu0 0
  %475 = vmatpush.bf16.msra.mxu0 0
  %476 = vmatpush.bf16.msra.mxu0 0
  %477 = vmatpush.bf16.msra.mxu0 %v152
  %478 = vmatpush.bf16.msra.mxu0 %v151
  %479 = vmatmul.bf16.gmra.mxu0 %v469
  %v480 = vpop.f32.mrf.mxu0
  %v481 = vadd.f32 0.0, %v480
  %v482 = vpop.f32.mrf.mxu0
  %483 = vdwg.mxu0
  %v484 = vadd.f32 %v144, %v481
  %v485 = vmul.f32 %v484, 2.0
  %v486 = vsel %vm157, %v485, %v484
  %v487 = vxor.u32 %v486, 2147483648
  %v488 = vmul.f32 %v487, 1.442695
  %v489 = vpow.pop %v488
  %v490 = vadd.f32 %v489, 1.0
  %v491 = vrcp.pop %v490
  %v492 = vmul.f32 %v490, %v491
  %v493 = vsub.f32 1.0, %v492
  %v494 = vmul.f32 %v491, %v493
  %v495 = vadd.f32 %v491, %v494
  %vm496 = vweird.f32 %v490
  %vm497 = vweird.f32 %v491
  %vm498 = vmor %vm496, %vm497
  %v499 = vsel %vm498, %v491, %v495
  %v500 = vand.u32 2147483647, %v490
  %vm501 = vcmp.eq.f32.partialorder %v500, 8.507059e+37
  %v502 = vand.u32 %v490, 2147483648
  %v503 = vor.u32 1.1754944e-38, %v502
  %v504 = vsel %vm501, %v503, %v499
  %v505 = vmul.f32 1.0, %v504
  %v506 = vmul.f32 %v505, 2.0
  %v507 = vsub.f32 %v506, 1.0
  %v508 = vsel %vm157, %v507, %v505
  %v509 = vmul.f32 %v508, %v457
  %511 = vrot.lane.b32.xlu0 %v508, 64
  %v512 = vpop.permute.xlu0 %511
  %v514 = vmul.f32 %v508, %v512
  %516 = vrot.lane.b32.xlu0 %v514, 32
  %v517 = vpop.permute.xlu0 %516
  %v519 = vadd.f32 %v509, %v517
  %v520 = vtanh.pop %v519
  %522 = vrot.lane.b32.xlu0 %v520, 64
  %v523 = vpop.permute.xlu0 %522
  %v525 = vmul.f32 %v508, %v523
  %v526 = vpack.c.bf16 %v525, %v525
  %528 = vrot.lane.b32.xlu0 %v526, 32
  %v529 = vpop.permute.xlu0 %528
  %v531 = vsel %vm158, %v529, 0
  %533 = vmatpush.bf16.msra.mxu0 0
  %534 = vmatpush.bf16.msra.mxu0 0
  %535 = vmatpush.bf16.msra.mxu0 0
  %536 = vmatpush.bf16.msra.mxu0 0
  %537 = vmatpush.bf16.msra.mxu0 0
  %538 = vmatpush.bf16.msra.mxu0 0
  %539 = vmatpush.bf16.msra.mxu0 %v152
  %540 = vmatpush.bf16.msra.mxu0 %v151
  %541 = vmatmul.bf16.gmra.mxu0 %v531
  %v542 = vpop.f32.mrf.mxu0
  %v543 = vadd.f32 0.0, %v542
  %v544 = vpop.f32.mrf.mxu0
  %545 = vdwg.mxu0
  %v546 = vadd.f32 %v145, %v543
  %v547 = vmul.f32 %v546, 2.0
  %v548 = vsel %vm157, %v547, %v546
  %v549 = vxor.u32 %v548, 2147483648
  %v550 = vmul.f32 %v549, 1.442695
  %v551 = vpow.pop %v550
  %v552 = vadd.f32 %v551, 1.0
  %v553 = vrcp.pop %v552
  %v554 = vmul.f32 %v552, %v553
  %v555 = vsub.f32 1.0, %v554
  %v556 = vmul.f32 %v553, %v555
  %v557 = vadd.f32 %v553, %v556
  %vm558 = vweird.f32 %v552
  %vm559 = vweird.f32 %v553
  %vm560 = vmor %vm558, %vm559
  %v561 = vsel %vm560, %v553, %v557
  %v562 = vand.u32 2147483647, %v552
  %vm563 = vcmp.eq.f32.partialorder %v562, 8.507059e+37
  %v564 = vand.u32 %v552, 2147483648
  %v565 = vor.u32 1.1754944e-38, %v564
  %v566 = vsel %vm563, %v565, %v561
  %v567 = vmul.f32 1.0, %v566
  %v568 = vmul.f32 %v567, 2.0
  %v569 = vsub.f32 %v568, 1.0
  %v570 = vsel %vm157, %v569, %v567
  %v571 = vmul.f32 %v570, %v519
  %573 = vrot.lane.b32.xlu0 %v570, 64
  %v574 = vpop.permute.xlu0 %573
  %v576 = vmul.f32 %v570, %v574
  %578 = vrot.lane.b32.xlu0 %v576, 32
  %v579 = vpop.permute.xlu0 %578
  %v581 = vadd.f32 %v571, %v579
  %v582 = vtanh.pop %v581
  %584 = vrot.lane.b32.xlu0 %v582, 64
  %v585 = vpop.permute.xlu0 %584
  %v587 = vmul.f32 %v570, %v585
  %v588 = vpack.c.bf16 %v587, %v587
  %590 = vrot.lane.b32.xlu0 %v588, 32
  %v591 = vpop.permute.xlu0 %590
  %v593 = vsel %vm158, %v591, 0
  %595 = vmatpush.bf16.msra.mxu0 0
  %596 = vmatpush.bf16.msra.mxu0 0
  %597 = vmatpush.bf16.msra.mxu0 0
  %598 = vmatpush.bf16.msra.mxu0 0
  %599 = vmatpush.bf16.msra.mxu0 0
  %600 = vmatpush.bf16.msra.mxu0 0
  %601 = vmatpush.bf16.msra.mxu0 %v152
  %602 = vmatpush.bf16.msra.mxu0 %v151
  %603 = vmatmul.bf16.gmra.mxu0 %v593
  %v604 = vpop.f32.mrf.mxu0
  %v605 = vadd.f32 0.0, %v604
  %v606 = vpop.f32.mrf.mxu0
  %607 = vdwg.mxu0
  %v608 = vadd.f32 %v146, %v605
  %v609 = vmul.f32 %v608, 2.0
  %v610 = vsel %vm157, %v609, %v608
  %v611 = vxor.u32 %v610, 2147483648
  %v612 = vmul.f32 %v611, 1.442695
  %v613 = vpow.pop %v612
  %v614 = vadd.f32 %v613, 1.0
  %v615 = vrcp.pop %v614
  %v616 = vmul.f32 %v614, %v615
  %v617 = vsub.f32 1.0, %v616
  %v618 = vmul.f32 %v615, %v617
  %v619 = vadd.f32 %v615, %v618
  %vm620 = vweird.f32 %v614
  %vm621 = vweird.f32 %v615
  %vm622 = vmor %vm620, %vm621
  %v623 = vsel %vm622, %v615, %v619
  %v624 = vand.u32 2147483647, %v614
  %vm625 = vcmp.eq.f32.partialorder %v624, 8.507059e+37
  %v626 = vand.u32 %v614, 2147483648
  %v627 = vor.u32 1.1754944e-38, %v626
  %v628 = vsel %vm625, %v627, %v623
  %v629 = vmul.f32 1.0, %v628
  %v630 = vmul.f32 %v629, 2.0
  %v631 = vsub.f32 %v630, 1.0
  %v632 = vsel %vm157, %v631, %v629
  %v633 = vmul.f32 %v632, %v581
  %635 = vrot.lane.b32.xlu0 %v632, 64
  %v636 = vpop.permute.xlu0 %635
  %v638 = vmul.f32 %v632, %v636
  %640 = vrot.lane.b32.xlu0 %v638, 32
  %v641 = vpop.permute.xlu0 %640
  %v643 = vadd.f32 %v633, %v641
  %v644 = vtanh.pop %v643
  %646 = vrot.lane.b32.xlu0 %v644, 64
  %v647 = vpop.permute.xlu0 %646
  %v649 = vmul.f32 %v632, %v647
  %v650 = vld [vmem:[%s4] sm:$0x1]
  %v652 = vperm.slane %v650, 0
  %653 = vrot.lane.b32.xlu0 %v652, 96
  %v654 = vpop.permute.xlu0 %653
  %v656 = vmul.f32 %v649, %v654
  %658 = vrot.lane.b32.xlu0 %v656, 32
  %v659 = vpop.permute.xlu0 %658
  %v661 = vsel %vm158, %v659, 0.0
  %662 = vadd.xlane.f32.xlu0 %v661
  %v663 = vpop.xlane.xlu0 %662
  %v664 = vld [vmem:[#allocation2] sm:$0x1]
  %v666 = vperm.slane %v664, 0
  %v668 = vadd.f32 %v663, %v666
  %vm669 = vcmask 7168
  %670 = vst.msk [vmem:[%s6] sm:$0xff] %vm669, %v668
  // Predicated region
  $region26: #{tpu_custom_call.1} parent=0 // pred_check
    _
  $region27: #{tpu_custom_call.1} parent=0 // pred_check_branch
    %672 = sbr.rel (0) target = $region29
  $region28: #{tpu_custom_call.1} parent=0 // pred_region
    _
  $region29: #{tpu_custom_call.1} parent=0 // pred_fallthru
    _
  // Predicated region
  $region30: #{tpu_custom_call.1} parent=0 // pred_check
    _
  $region31: #{tpu_custom_call.1} parent=0 // pred_check_branch
    %674 = sbr.rel (0) target = $region33
  $region32: #{tpu_custom_call.1} parent=0 // pred_region
    _
  $region33: #{tpu_custom_call.1} parent=0 // pred_fallthru
    _

</llo_original>
